<compile_context>
chip_gen: v6e
topology: v6e:2x2x1
jax: 0.10.0
libtpu: 0.0.40
codegen_flags: <defaults>
</compile_context>

<pallas_src>
import jax
import jax.numpy as jnp
import numpy as np
from jax import lax
from jax.experimental import pallas as pl
from jax.experimental.pallas import tpu as pltpu

# ----------------------------- model dims (small) ---------------------------
VOCAB = 32
EMBED = 16                       # embed_dim
HIDDEN = 32                      # hidden_dim
KSIZES = (3, 5, 7)
MAX_PAD = max(k // 2 for k in KSIZES)        # 3
TAPS = 2 * MAX_PAD + 1                       # 7
NUM_CLASSES = 2


# --------------------------------- kernel -----------------------------------
def _symptom_cnn_kernel(ids_ref, emb_ref, w_ref, b_ref, wfc_ref, bfc_ref,
                        logits_ref, concat_ref):
    BB, Lp, _ = ids_ref.shape                # ids pre-padded by MAX_PAD with -1
    V, E = emb_ref.shape
    H3 = w_ref.shape[1]                      # 3 * HIDDEN
    L = Lp - 2 * MAX_PAD
    cdt = emb_ref.dtype                      # matmul operand dtype (f32 or bf16)

    # ---- embedding gather as a one-hot MXU matmul (id == -1 -> zero row) ----
    ids = ids_ref[...]                                            # (BB, Lp, 1) int32
    iota = lax.broadcasted_iota(jnp.int32, (BB, Lp, V), 2)
    onehot = (ids == iota).astype(cdt)                            # (BB, Lp, V)
    xp = jnp.dot(onehot.reshape(BB * Lp, V), emb_ref[...],
                 preferred_element_type=cdt)                      # (BB*Lp, E)
    xp = xp.reshape(BB, Lp, E)                                    # padded NLC activation

    # ---- im2col: 7 shifted windows on the lane axis -> ONE fused conv matmul ----
    xcol = jnp.concatenate([xp[:, j:j + L, :] for j in range(TAPS)], axis=-1)
    xcol = xcol.reshape(BB * L, TAPS * E)                         # (BB*L, 112)
    y = jnp.dot(xcol, w_ref[...],
                preferred_element_type=jnp.float32)               # (BB*L, 96) f32 acc
    y = jnp.maximum(y + b_ref[...], 0.0)                          # bias + ReLU (f32 VPU)

    # ---- adaptive_max_pool1d(., 1) for all three convs at once ----
    concat = jnp.max(y.reshape(BB, L, H3), axis=1)                # (BB, 3H)
    concat_ref[...] = concat

    # ---- tiny FC head (N=2): VPU multiply + lane reduction, keep it off the MXU ----
    cols = [jnp.sum(concat * wfc_ref[c:c + 1, :], axis=-1, keepdims=True)
            for c in range(NUM_CLASSES)]                          # each (BB, 1)
    logits_ref[...] = jnp.concatenate(cols, axis=1) + bfc_ref[...]


# -------------------------------- wrapper -----------------------------------
def symptom_policy_cnn_forward(params, input_ids, attention_mask=None,
                               compute_dtype=jnp.float32):
    B, L = input_ids.shape
    Lp = L + 2 * MAX_PAD

    ids = input_ids.astype(jnp.int32)
    if attention_mask is not None:
        # TODO(synk): non-binary attention_mask values would need a per-token
        # scale (PyTorch multiplies by the mask value); binary masks (the
        # standard case) are exact: masked id -> -1 -> zero one-hot row.
        ids = jnp.where(attention_mask > 0, ids, jnp.int32(-1))
    # Conv1d zero-padding folded in the same way: pad ids with -1.
    ids = jnp.pad(ids, ((0, 0), (MAX_PAD, MAX_PAD)), constant_values=-1)
    ids3 = ids[..., None]                                          # (B, Lp, 1)

    emb = params['embedding'].astype(compute_dtype)                # (V, E)
    w_fused = params['w_conv_packed'].astype(compute_dtype)        # (7E, 3H)
    b_fused = params['b_conv_packed']                              # (1, 3H) f32
    wfc = params['wfc_torch']                                      # (2, 3H) f32
    bfc = params['bfc']                                            # (1, 2)  f32

    bb = min(B, 128)                                               # batch tile
    grid = (pl.cdiv(B, bb),)
    const2 = lambda i: (0, 0)

    logits, concat = pl.pallas_call(
        _symptom_cnn_kernel,
        out_shape=(jax.ShapeDtypeStruct((B, NUM_CLASSES), jnp.float32),
                   jax.ShapeDtypeStruct((B, len(KSIZES) * HIDDEN), jnp.float32)),
        grid=grid,
        in_specs=[
            pl.BlockSpec((bb, Lp, 1), lambda i: (i, 0, 0)),        # ids (per batch tile)
            pl.BlockSpec(emb.shape, const2),                       # embedding table
            pl.BlockSpec(w_fused.shape, const2),                   # packed conv weights
            pl.BlockSpec(b_fused.shape, const2),                   # packed conv bias
            pl.BlockSpec(wfc.shape, const2),                       # FC weight
            pl.BlockSpec(bfc.shape, const2),                       # FC bias
        ],
        out_specs=(pl.BlockSpec((bb, NUM_CLASSES), lambda i: (i, 0)),
                   pl.BlockSpec((bb, len(KSIZES) * HIDDEN), lambda i: (i, 0))),
        compiler_params=pltpu.CompilerParams(
            dimension_semantics=("parallel",)),
    )(ids3, emb, w_fused, b_fused, wfc, bfc)
    return logits, concat


# ----------------------- deterministic parameter init -----------------------
def init_params(key):
    ks = jax.random.split(key, 9)

    def uniform(k, shape, fan_in):
        bound = 1.0 / np.sqrt(fan_in)
        return jax.random.uniform(k, shape, jnp.float32, -bound, bound)

    params = {'embedding': jax.random.normal(ks[0], (VOCAB, EMBED), jnp.float32)}

    # Pack all three conv kernels into one (7E, 3H) matrix aligned to MAX_PAD.
    wp = np.zeros((TAPS * EMBED, len(KSIZES) * HIDDEN), np.float32)
    bp = np.zeros((1, len(KSIZES) * HIDDEN), np.float32)
    for i, ksz in enumerate(KSIZES):
        w = uniform(ks[1 + 2 * i], (HIDDEN, EMBED, ksz), EMBED * ksz)   # torch (H, E, k)
        b = uniform(ks[2 + 2 * i], (HIDDEN,), EMBED * ksz)
        params[f'w{ksz}_torch'] = w
        params[f'b{ksz}_torch'] = b
        off = MAX_PAD - ksz // 2
        wnp = np.asarray(w)
        for jk in range(ksz):
            t = off + jk
            wp[t * EMBED:(t + 1) * EMBED, i * HIDDEN:(i + 1) * HIDDEN] = wnp[:, :, jk].T
        bp[0, i * HIDDEN:(i + 1) * HIDDEN] = np.asarray(b)
    params['w_conv_packed'] = jnp.asarray(wp)
    params['b_conv_packed'] = jnp.asarray(bp)

    wfc = uniform(ks[7], (NUM_CLASSES, len(KSIZES) * HIDDEN), len(KSIZES) * HIDDEN)
    bfc = uniform(ks[8], (NUM_CLASSES,), len(KSIZES) * HIDDEN)
    params['wfc_torch'] = wfc                                        # (2, 3H)
    params['bfc'] = bfc.reshape(1, NUM_CLASSES)
    return params


# -------------------------- pure-JAX reference check ------------------------
def reference_forward(params, input_ids, attention_mask=None):
    x = jnp.take(params['embedding'], input_ids, axis=0).astype(jnp.float32)
    if attention_mask is not None:
        x = x * attention_mask.astype(jnp.float32)[..., None]
    xc = jnp.transpose(x, (0, 2, 1))                                 # (B, E, L)
    pooled = []
    for ksz in KSIZES:
        w = params[f'w{ksz}_torch']                                  # (H, E, k)
        b = params[f'b{ksz}_torch']
        y = lax.conv_general_dilated(xc, w, window_strides=(1,),
                                     padding=[(ksz // 2, ksz // 2)],
                                     dimension_numbers=('NCH', 'OIH', 'NCH'))
        y = jnp.maximum(y + b[None, :, None], 0.0)
        pooled.append(jnp.max(y, axis=-1))
    concat = jnp.concatenate(pooled, axis=1)
    logits = concat @ params['wfc_torch'].T + params['bfc'].reshape(-1)
    return logits, concat


# ----------------------------------- main ------------------------------------
if __name__ == "__main__":
    key = jax.random.PRNGKey(0)
    k_ids, k_params = jax.random.split(key)

    B, L = 2, 8
    input_ids = jax.random.randint(k_ids, (B, L), 0, VOCAB, dtype=jnp.int32)
    attention_mask = jnp.array([[1, 1, 1, 1, 1, 1, 1, 1],
                                [1, 1, 1, 1, 1, 0, 0, 0]], dtype=jnp.float32)

    params = init_params(k_params)
    ref_logits, ref_concat = reference_forward(params, input_ids, attention_mask)

    # f32 matmul operands (default): tight check.
    logits, concat = symptom_policy_cnn_forward(
        params, input_ids, attention_mask, compute_dtype=jnp.float32)
    jax.block_until_ready((logits, concat))
    ok_f32 = (np.allclose(np.asarray(logits), np.asarray(ref_logits), rtol=1e-3, atol=1e-3)
              and np.allclose(np.asarray(concat), np.asarray(ref_concat), rtol=1e-3, atol=1e-3))

    # bf16 matmul operands (MXU-native on v6e/v7x), f32 accumulate/epilogue: loose check.
    logits16, concat16 = symptom_policy_cnn_forward(
        params, input_ids, attention_mask, compute_dtype=jnp.bfloat16)
    jax.block_until_ready((logits16, concat16))
    ok_bf16 = (np.allclose(np.asarray(logits16), np.asarray(ref_logits), rtol=1e-1, atol=1e-1)
               and np.allclose(np.asarray(concat16), np.asarray(ref_concat), rtol=1e-1, atol=1e-1))

    if not (ok_f32 and ok_bf16):
        raise SystemExit("Pallas kernel mismatch vs reference")
    print("KERNEL_OK")
</pallas_src>

<mosaic_0001>
module attributes {stable_mosaic.version = 11 : i64} {
  func.func @_symptom_cnn_kernel(%arg0: i32, %arg1: memref<2x14x1xi32, #tpu.memory_space<vmem>>, %arg2: memref<32x16xf32, #tpu.memory_space<vmem>>, %arg3: memref<112x96xf32, #tpu.memory_space<vmem>>, %arg4: memref<1x96xf32, #tpu.memory_space<vmem>>, %arg5: memref<2x96xf32, #tpu.memory_space<vmem>>, %arg6: memref<1x2xf32, #tpu.memory_space<vmem>>, %arg7: memref<2x2xf32, #tpu.memory_space<vmem>>, %arg8: memref<2x96xf32, #tpu.memory_space<vmem>>) attributes {dimension_semantics = [#tpu.dimension_semantics<parallel>], iteration_bounds = array<i64: 1>, scalar_prefetch = 0 : i64, scratch_operands = 0 : i64, tpu.core_type = #tpu.core_type<tc>, window_params = [{transform_indices = @transform_0, window_bounds = array<i64: 2, 14, 1>}, {pipeline_mode = #tpu.pipeline_mode<synchronous>, transform_indices = @transform_1, window_bounds = array<i64: 32, 16>}, {pipeline_mode = #tpu.pipeline_mode<synchronous>, transform_indices = @transform_2, window_bounds = array<i64: 112, 96>}, {pipeline_mode = #tpu.pipeline_mode<synchronous>, transform_indices = @transform_3, window_bounds = array<i64: 1, 96>}, {pipeline_mode = #tpu.pipeline_mode<synchronous>, transform_indices = @transform_4, window_bounds = array<i64: 2, 96>}, {pipeline_mode = #tpu.pipeline_mode<synchronous>, transform_indices = @transform_5, window_bounds = array<i64: 1, 2>}, {transform_indices = @transform_6, window_bounds = array<i64: 2, 2>}, {transform_indices = @transform_7, window_bounds = array<i64: 2, 96>}]} {
    %c0 = arith.constant 0 : index
    %c0_0 = arith.constant 0 : index
    %c0_1 = arith.constant 0 : index
    %0 = vector.load %arg1[%c0, %c0_0, %c0_1] : memref<2x14x1xi32, #tpu.memory_space<vmem>>, vector<2x14x1xi32>
    %1 = tpu.iota {dimensions = array<i32: 2>} : vector<2x14x32xi32>
    %2 = vector.broadcast %0 : vector<2x14x1xi32> to vector<2x14x32xi32>
    %3 = arith.cmpi eq, %2, %1 : vector<2x14x32xi32>
    %4 = arith.extui %3 : vector<2x14x32xi1> to vector<2x14x32xi32>
    %5 = arith.sitofp %4 : vector<2x14x32xi32> to vector<2x14x32xf32>
    %6 = vector.shape_cast %5 : vector<2x14x32xf32> to vector<28x32xf32>
    %c0_2 = arith.constant 0 : index
    %c0_3 = arith.constant 0 : index
    %7 = vector.load %arg2[%c0_2, %c0_3] : memref<32x16xf32, #tpu.memory_space<vmem>>, vector<32x16xf32>
    %cst = arith.constant dense<0.000000e+00> : vector<28x16xf32>
    %8 = tpu.matmul %6, %7, %cst {dimension_numbers = #tpu.dot_dimension_numbers<[1], [0], [0], [1], [0, 0, 1, 1], [], []>} : vector<28x32xf32>, vector<32x16xf32>, vector<28x16xf32> -> vector<28x16xf32>
    %9 = vector.shape_cast %8 : vector<28x16xf32> to vector<2x14x16xf32>
    %10 = vector.extract_strided_slice %9 {offsets = [0, 0, 0], sizes = [2, 8, 16], strides = [1, 1, 1]} : vector<2x14x16xf32> to vector<2x8x16xf32>
    %11 = vector.extract_strided_slice %9 {offsets = [0, 1, 0], sizes = [2, 8, 16], strides = [1, 1, 1]} : vector<2x14x16xf32> to vector<2x8x16xf32>
    %12 = vector.extract_strided_slice %9 {offsets = [0, 2, 0], sizes = [2, 8, 16], strides = [1, 1, 1]} : vector<2x14x16xf32> to vector<2x8x16xf32>
    %13 = vector.extract_strided_slice %9 {offsets = [0, 3, 0], sizes = [2, 8, 16], strides = [1, 1, 1]} : vector<2x14x16xf32> to vector<2x8x16xf32>
    %14 = vector.extract_strided_slice %9 {offsets = [0, 4, 0], sizes = [2, 8, 16], strides = [1, 1, 1]} : vector<2x14x16xf32> to vector<2x8x16xf32>
    %15 = vector.extract_strided_slice %9 {offsets = [0, 5, 0], sizes = [2, 8, 16], strides = [1, 1, 1]} : vector<2x14x16xf32> to vector<2x8x16xf32>
    %16 = vector.extract_strided_slice %9 {offsets = [0, 6, 0], sizes = [2, 8, 16], strides = [1, 1, 1]} : vector<2x14x16xf32> to vector<2x8x16xf32>
    %17 = tpu.concatenate %10, %11, %12, %13, %14, %15, %16 in 2 : vector<2x8x16xf32>, vector<2x8x16xf32>, vector<2x8x16xf32>, vector<2x8x16xf32>, vector<2x8x16xf32>, vector<2x8x16xf32>, vector<2x8x16xf32> -> vector<2x8x112xf32>
    %18 = vector.shape_cast %17 : vector<2x8x112xf32> to vector<16x112xf32>
    %c0_4 = arith.constant 0 : index
    %c0_5 = arith.constant 0 : index
    %19 = vector.load %arg3[%c0_4, %c0_5] : memref<112x96xf32, #tpu.memory_space<vmem>>, vector<112x96xf32>
    %cst_6 = arith.constant dense<0.000000e+00> : vector<16x96xf32>
    %20 = tpu.matmul %18, %19, %cst_6 {dimension_numbers = #tpu.dot_dimension_numbers<[1], [0], [0], [1], [0, 0, 1, 1], [], []>} : vector<16x112xf32>, vector<112x96xf32>, vector<16x96xf32> -> vector<16x96xf32>
    %c0_7 = arith.constant 0 : index
    %c0_8 = arith.constant 0 : index
    %21 = vector.load %arg4[%c0_7, %c0_8] : memref<1x96xf32, #tpu.memory_space<vmem>>, vector<1x96xf32>
    %22 = vector.broadcast %21 : vector<1x96xf32> to vector<16x96xf32>
    %23 = arith.addf %20, %22 : vector<16x96xf32>
    %cst_9 = arith.constant 0.000000e+00 : f32
    %24 = vector.broadcast %cst_9 : f32 to vector<16x96xf32>
    %25 = arith.maximumf %23, %24 : vector<16x96xf32>
    %26 = vector.shape_cast %25 : vector<16x96xf32> to vector<2x8x96xf32>
    %cst_10 = arith.constant dense<0xFF800000> : vector<2x96xf32>
    %27 = vector.multi_reduction <maximumf>, %26, %cst_10 [1] : vector<2x8x96xf32> to vector<2x96xf32>
    %c0_11 = arith.constant 0 : index
    %c0_12 = arith.constant 0 : index
    %28 = vector.load %arg8[%c0_11, %c0_12] : memref<2x96xf32, #tpu.memory_space<vmem>>, vector<2x96xf32>
    tpu.vector_store %arg8[%c0_11, %c0_12], %27 {strides = array<i32>} : memref<2x96xf32, #tpu.memory_space<vmem>>, vector<2x96xf32>,
    %c0_13 = arith.constant 0 : index
    %c0_14 = arith.constant 0 : index
    %29 = vector.load %arg5[%c0_13, %c0_14] : memref<2x96xf32, #tpu.memory_space<vmem>>, vector<1x96xf32>
    %30 = vector.broadcast %29 : vector<1x96xf32> to vector<2x96xf32>
    %31 = arith.mulf %27, %30 : vector<2x96xf32>
    %cst_15 = arith.constant dense<0.000000e+00> : vector<2xf32>
    %32 = vector.multi_reduction <add>, %31, %cst_15 [1] : vector<2x96xf32> to vector<2xf32>
    %33 = vector.shape_cast %32 : vector<2xf32> to vector<2x1xf32>
    %c1 = arith.constant 1 : index
    %c0_16 = arith.constant 0 : index
    %34 = vector.load %arg5[%c1, %c0_16] : memref<2x96xf32, #tpu.memory_space<vmem>>, vector<1x96xf32>
    %35 = vector.broadcast %34 : vector<1x96xf32> to vector<2x96xf32>
    %36 = arith.mulf %27, %35 : vector<2x96xf32>
    %cst_17 = arith.constant dense<0.000000e+00> : vector<2xf32>
    %37 = vector.multi_reduction <add>, %36, %cst_17 [1] : vector<2x96xf32> to vector<2xf32>
    %38 = vector.shape_cast %37 : vector<2xf32> to vector<2x1xf32>
    %39 = tpu.concatenate %33, %38 in 1 : vector<2x1xf32>, vector<2x1xf32> -> vector<2x2xf32>
    %c0_18 = arith.constant 0 : index
    %c0_19 = arith.constant 0 : index
    %40 = vector.load %arg6[%c0_18, %c0_19] : memref<1x2xf32, #tpu.memory_space<vmem>>, vector<1x2xf32>
    %41 = vector.broadcast %40 : vector<1x2xf32> to vector<2x2xf32>
    %42 = arith.addf %39, %41 : vector<2x2xf32>
    %c0_20 = arith.constant 0 : index
    %c0_21 = arith.constant 0 : index
    %43 = vector.load %arg7[%c0_20, %c0_21] : memref<2x2xf32, #tpu.memory_space<vmem>>, vector<2x2xf32>
    tpu.vector_store %arg7[%c0_20, %c0_21], %42 {strides = array<i32>} : memref<2x2xf32, #tpu.memory_space<vmem>>, vector<2x2xf32>,
    return
  }
  func.func @transform_0(%arg0: i32) -> (i32, i32, i32) {
    %c0_i32 = arith.constant 0 : i32
    %c0_i32_0 = arith.constant 0 : i32
    %c0_i32_1 = arith.constant 0 : i32
    return %arg0, %c0_i32, %c0_i32_0 : i32, i32, i32
  }
  func.func @transform_1(%arg0: i32) -> (i32, i32) {
    %c0_i32 = arith.constant 0 : i32
    %c0_i32_0 = arith.constant 0 : i32
    %c0_i32_1 = arith.constant 0 : i32
    return %c0_i32, %c0_i32_0 : i32, i32
  }
  func.func @transform_2(%arg0: i32) -> (i32, i32) {
    %c0_i32 = arith.constant 0 : i32
    %c0_i32_0 = arith.constant 0 : i32
    %c0_i32_1 = arith.constant 0 : i32
    return %c0_i32, %c0_i32_0 : i32, i32
  }
  func.func @transform_3(%arg0: i32) -> (i32, i32) {
    %c0_i32 = arith.constant 0 : i32
    %c0_i32_0 = arith.constant 0 : i32
    %c0_i32_1 = arith.constant 0 : i32
    return %c0_i32, %c0_i32_0 : i32, i32
  }
  func.func @transform_4(%arg0: i32) -> (i32, i32) {
    %c0_i32 = arith.constant 0 : i32
    %c0_i32_0 = arith.constant 0 : i32
    %c0_i32_1 = arith.constant 0 : i32
    return %c0_i32, %c0_i32_0 : i32, i32
  }
  func.func @transform_5(%arg0: i32) -> (i32, i32) {
    %c0_i32 = arith.constant 0 : i32
    %c0_i32_0 = arith.constant 0 : i32
    %c0_i32_1 = arith.constant 0 : i32
    return %c0_i32, %c0_i32_0 : i32, i32
  }
  func.func @transform_6(%arg0: i32) -> (i32, i32) {
    %c0_i32 = arith.constant 0 : i32
    %c0_i32_0 = arith.constant 0 : i32
    return %arg0, %c0_i32 : i32, i32
  }
  func.func @transform_7(%arg0: i32) -> (i32, i32) {
    %c0_i32 = arith.constant 0 : i32
    %c0_i32_0 = arith.constant 0 : i32
    return %arg0, %c0_i32 : i32, i32
  }
}

</mosaic_0001>

<llo_original>
// kernel: tpu_custom_call.1
$region0: #{tpu_custom_call.1}
  #allocation0 [shape = 'u32[]', space=smem, size = 0x4, offset = 0x4, fixed_abs, tag = 'smem constant byte address 0x4 - core index']
  #allocation1 [shape = 'u32[144,128]{1,0:T(1,128)}', space=vmem, size = 0x12000, scoped, tag = 'internal scratch']
  %s0 = inlined_call_operand.vmem [shape: s32[2,14,1], index: 0, kind: input, shape index: {}]
  %s1 = inlined_call_operand.vmem [shape: f32[32,16], index: 1, kind: input, shape index: {}]
  %s2 = inlined_call_operand.vmem [shape: f32[112,96], index: 2, kind: input, shape index: {}]
  %s3 = inlined_call_operand.vmem [shape: f32[1,96], index: 3, kind: input, shape index: {}]
  %s4 = inlined_call_operand.vmem [shape: f32[2,96], index: 4, kind: input, shape index: {}]
  %s5 = inlined_call_operand.vmem [shape: f32[1,2], index: 5, kind: input, shape index: {}]
  %s6 = inlined_call_operand.hbm [shape: f32[2,2], index: 6, kind: output, shape index: {0}]
  %s7 = inlined_call_operand.hbm [shape: f32[2,96], index: 7, kind: output, shape index: {1}]
  %8 = xla_tuple %s6, %s7
  %s9 = sld [smem:[#allocation0]]
  $region42: #{tpu_custom_call.1} parent=0
    _
  %s11 = ssub.s32 1, %s9
  %s12 = scalar_select 0, %s11, %s9
  $region1: #{tpu_custom_call.1} parent=0
    #allocation2 [shape = 'u8[1024]{0}', space=vmem, size = 0x400, scoped, tag = 'output window, operand 0, single buffered']
    #allocation3 [shape = 's32[1]{0}', space=sflag, size = 0x4, scoped, tag = 'scoped memory for tpu_custom_call.1']
    #allocation4 [shape = 'u8[1024]{0}', space=vmem, size = 0x400, scoped, tag = 'output window, operand 1, single buffered']
    #allocation5 [shape = 's32[1]{0}', space=sflag, size = 0x4, scoped, tag = 'scoped memory for tpu_custom_call.1']
    %13 = vsyncpa [#allocation3], 0
    %14 = vsyncpa [#allocation5], 0
    // Predicated region
    $region2: #{tpu_custom_call.1} parent=1 // pred_check
      _
    $region3: #{tpu_custom_call.1} parent=1 // pred_check_branch
      %16 = sbr.rel (0) target = $region5
    $region4: #{tpu_custom_call.1} parent=1 // pred_region
      _
    $region5: #{tpu_custom_call.1} parent=1 // pred_fallthru
      _
    // Predicated region
    $region6: #{tpu_custom_call.1} parent=1 // pred_check
      _
    $region7: #{tpu_custom_call.1} parent=1 // pred_check_branch
      %18 = sbr.rel (0) target = $region9
    $region8: #{tpu_custom_call.1} parent=1 // pred_region
      _
    $region9: #{tpu_custom_call.1} parent=1 // pred_fallthru
      _
    // Predicated region
    $region10: #{tpu_custom_call.1} parent=1 // pred_check
      _
    $region11: #{tpu_custom_call.1} parent=1 // pred_check_branch
      %20 = sbr.rel (0) target = $region13
    $region12: #{tpu_custom_call.1} parent=1 // pred_region
      _
    $region13: #{tpu_custom_call.1} parent=1 // pred_fallthru
      _
    // Predicated region
    $region14: #{tpu_custom_call.1} parent=1 // pred_check
      _
    $region15: #{tpu_custom_call.1} parent=1 // pred_check_branch
      %22 = sbr.rel (0) target = $region17
    $region16: #{tpu_custom_call.1} parent=1 // pred_region
      _
    $region17: #{tpu_custom_call.1} parent=1 // pred_fallthru
      _
    // Predicated region
    $region18: #{tpu_custom_call.1} parent=1 // pred_check
      _
    $region19: #{tpu_custom_call.1} parent=1 // pred_check_branch
      %24 = sbr.rel (0) target = $region21
    $region20: #{tpu_custom_call.1} parent=1 // pred_region
      _
    $region21: #{tpu_custom_call.1} parent=1 // pred_fallthru
      _
    // Predicated region
    $region22: #{tpu_custom_call.1} parent=1 // pred_check
      _
    $region23: #{tpu_custom_call.1} parent=1 // pred_check_branch
      %26 = sbr.rel (0) target = $region25
    $region24: #{tpu_custom_call.1} parent=1 // pred_region
      _
    $region25: #{tpu_custom_call.1} parent=1 // pred_fallthru
      _
    %v27 = vld [vmem:[%s0] sm:$0xff]
    %v28 = vld [vmem:[%s0 + $0x8] sm:$0x3f]
    %v29 = vld [vmem:[%s0 + $0x10] sm:$0xff]
    %v30 = vld [vmem:[%s0 + $0x18] sm:$0x3f]
    %v31 = vlaneseq
    %v32 = vand.u32 %v31, 127
    %33 = vset.pattern.permute.xlu0 0
    %34 = vperm.xlu0 %33, %v27
    %v35 = vpop.permute.xlu0 %34
    %36 = vset.pattern.permute.xlu0 0
    %37 = vperm.xlu0 %36, %v28
    %v38 = vpop.permute.xlu0 %37
    %39 = vset.pattern.permute.xlu0 0
    %40 = vperm.xlu0 %39, %v29
    %v41 = vpop.permute.xlu0 %40
    %42 = vset.pattern.permute.xlu0 0
    %43 = vperm.xlu0 %42, %v30
    %v44 = vpop.permute.xlu0 %43
    %vm45 = vcmp.eq.s32.totalorder %v35, %v32
    %vm46 = vcmp.eq.s32.totalorder %v38, %v32
    %vm47 = vcmp.eq.s32.totalorder %v41, %v32
    %vm48 = vcmp.eq.s32.totalorder %v44, %v32
    %v49 = vsel %vm45, 1, 0
    %v50 = vsel %vm46, 1, 0
    %v51 = vsel %vm47, 1, 0
    %v52 = vsel %vm48, 1, 0
    %v53 = vcvt.s32.f32 %v49
    %v54 = vcvt.s32.f32 %v50
    %v55 = vcvt.s32.f32 %v51
    %v56 = vcvt.s32.f32 %v52
    %v61 = vcombine.high %v53, %v53
    %v63 = vunpack.c.l.s4 1983009808
    %v64 = vunpack.c.0.s8 %v63
    %v65 = vlaneseq
    %v66 = vshrl.u32 %v65, 7
    %v67 = vsub.s32 %v64, %v66
    %v68 = vrot.slane %v53, %v67
    %v70 = vunpack.c.l.s4 1983009808
    %v71 = vunpack.c.0.s8 %v70
    %v72 = vlaneseq
    %v73 = vshrl.u32 %v72, 7
    %v74 = vsub.s32 %v71, %v73
    %v75 = vrot.slane %v61, %v74
    %v76 = vcombine.high %v68, %v68
    %v77 = vcombine.high %v75, %v75
    %v78 = vcombine.high %v54, %v54
    %v80 = vunpack.c.l.s4 1983009808
    %v81 = vunpack.c.0.s8 %v80
    %v82 = vlaneseq
    %v83 = vshrl.u32 %v82, 7
    %v84 = vsub.s32 %v81, %v83
    %v85 = vrot.slane %v54, %v84
    %v87 = vunpack.c.l.s4 1983009808
    %v88 = vunpack.c.0.s8 %v87
    %v89 = vlaneseq
    %v90 = vshrl.u32 %v89, 7
    %v91 = vsub.s32 %v88, %v90
    %v92 = vrot.slane %v78, %v91
    %v93 = vcombine.high %v85, %v85
    %v94 = vcombine.high %v55, %v55
    %v96 = vunpack.c.l.s4 1983009808
    %v97 = vunpack.c.0.s8 %v96
    %v98 = vlaneseq
    %v99 = vshrl.u32 %v98, 7
    %v100 = vsub.s32 %v97, %v99
    %v101 = vrot.slane %v55, %v100
    %v103 = vunpack.c.l.s4 1983009808
    %v104 = vunpack.c.0.s8 %v103
    %v105 = vlaneseq
    %v106 = vshrl.u32 %v105, 7
    %v107 = vsub.s32 %v104, %v106
    %v108 = vrot.slane %v94, %v107
    %v109 = vcombine.high %v101, %v101
    %v110 = vcombine.high %v108, %v108
    %v111 = vcombine.high %v56, %v56
    %v113 = vunpack.c.l.s4 1983009808
    %v114 = vunpack.c.0.s8 %v113
    %v115 = vlaneseq
    %v116 = vshrl.u32 %v115, 7
    %v117 = vsub.s32 %v114, %v116
    %v118 = vrot.slane %v56, %v117
    %v120 = vunpack.c.l.s4 1983009808
    %v121 = vunpack.c.0.s8 %v120
    %v122 = vlaneseq
    %v123 = vshrl.u32 %v122, 7
    %v124 = vsub.s32 %v121, %v123
    %v125 = vrot.slane %v111, %v124
    %v126 = vcombine.high %v118, %v118
    %v127 = vld [vmem:[%s1] sm:$0xff]
    %v128 = vld [vmem:[%s1 + $0x8] sm:$0xff]
    %v129 = vld [vmem:[%s1 + $0x10] sm:$0xff]
    %v130 = vld [vmem:[%s1 + $0x18] sm:$0xff]
    %v131 = vcombine.low %v68, %v76
    %v132 = vcombine.low %v75, %v77
    %v134 = vunpack.c.l.s4 1983009808
    %v135 = vunpack.c.0.s8 %v134
    %v136 = vlaneseq
    %v137 = vshrl.u32 %v136, 7
    %v138 = vsub.s32 %v135, %v137
    %v139 = vrot.slane %v131, %v138
    %v141 = vunpack.c.l.s4 1983009808
    %v142 = vunpack.c.0.s8 %v141
    %v143 = vlaneseq
    %v144 = vshrl.u32 %v143, 7
    %v145 = vsub.s32 %v142, %v144
    %v146 = vrot.slane %v132, %v145
    %v147 = vcombine.low %v139, %v146
    %v148 = vcombine.low %v85, %v93
    %v149 = vcombine.low %v92, %v101
    %v151 = vunpack.c.l.s4 1983009808
    %v152 = vunpack.c.0.s8 %v151
    %v153 = vlaneseq
    %v154 = vshrl.u32 %v153, 7
    %v155 = vsub.s32 %v152, %v154
    %v156 = vrot.slane %v148, %v155
    %v158 = vunpack.c.l.s4 1983009808
    %v159 = vunpack.c.0.s8 %v158
    %v160 = vlaneseq
    %v161 = vshrl.u32 %v160, 7
    %v162 = vsub.s32 %v159, %v161
    %v163 = vrot.slane %v149, %v162
    %v164 = vcombine.low %v156, %v163
    %v165 = vcombine.low %v109, %v108
    %v166 = vcombine.low %v110, %v118
    %v168 = vunpack.c.l.s4 1983009808
    %v169 = vunpack.c.0.s8 %v168
    %v170 = vlaneseq
    %v171 = vshrl.u32 %v170, 7
    %v172 = vsub.s32 %v169, %v171
    %v173 = vrot.slane %v165, %v172
    %v175 = vunpack.c.l.s4 1983009808
    %v176 = vunpack.c.0.s8 %v175
    %v177 = vlaneseq
    %v178 = vshrl.u32 %v177, 7
    %v179 = vsub.s32 %v176, %v178
    %v180 = vrot.slane %v166, %v179
    %v181 = vcombine.low %v173, %v180
    %v182 = vcombine.low %v126, %v125
    %v184 = vunpack.c.l.s4 1983009808
    %v185 = vunpack.c.0.s8 %v184
    %v186 = vlaneseq
    %v187 = vshrl.u32 %v186, 7
    %v188 = vsub.s32 %v185, %v187
    %v189 = vrot.slane %v182, %v188
    %vm190 = vcmask 261120
    %v191 = vsel %vm190, %v147, 0
    %v193 = vsel %vm190, %v164, 0
    %v195 = vsel %vm190, %v181, 0
    %v197 = vsel %vm190, %v189, 0
    %199 = vmatprep.subr.mxu0 0.0
    %200 = vmatpush1.msra.mxu0 0.0
    %201 = vmatprep.subr.mxu0 0.0
    %202 = vmatpush1.msra.mxu0 0.0
    %203 = vmatprep.subr.mxu0 0.0
    %204 = vmatpush1.msra.mxu0 0.0
    %205 = vmatprep.subr.mxu0 0.0
    %206 = vmatpush1.msra.mxu0 0.0
    %207 = vmatprep.subr.mxu0 0.0
    %208 = vmatpush1.msra.mxu0 0.0
    %209 = vmatprep.subr.mxu0 0.0
    %210 = vmatpush1.msra.mxu0 0.0
    %211 = vmatprep.subr.mxu0 0.0
    %212 = vmatpush1.msra.mxu0 0.0
    %213 = vmatprep.subr.mxu0 0.0
    %214 = vmatpush1.msra.mxu0 0.0
    %215 = vmatprep.subr.mxu0 0.0
    %216 = vmatpush1.msra.mxu0 0.0
    %217 = vmatprep.subr.mxu0 0.0
    %218 = vmatpush1.msra.mxu0 0.0
    %219 = vmatprep.subr.mxu0 0.0
    %220 = vmatpush1.msra.mxu0 0.0
    %221 = vmatprep.subr.mxu0 0.0
    %222 = vmatpush1.msra.mxu0 0.0
    %223 = vmatprep.subr.mxu0 0.0
    %224 = vmatpush1.msra.mxu0 %v130
    %225 = vmatprep.subr.mxu0 0.0
    %226 = vmatpush1.msra.mxu0 %v129
    %227 = vmatprep.subr.mxu0 0.0
    %228 = vmatpush1.msra.mxu0 %v128
    %229 = vmatprep.subr.mxu0 0.0
    %230 = vmatpush1.msra.mxu0 %v127
    %231 = vmatprep.subr.mxu0 0.0
    %232 = vmatpush2.msra.mxu0 0.0
    %233 = vmatprep.subr.mxu0 0.0
    %234 = vmatpush2.msra.mxu0 0.0
    %235 = vmatprep.subr.mxu0 0.0
    %236 = vmatpush2.msra.mxu0 0.0
    %237 = vmatprep.subr.mxu0 0.0
    %238 = vmatpush2.msra.mxu0 0.0
    %239 = vmatprep.subr.mxu0 0.0
    %240 = vmatpush2.msra.mxu0 0.0
    %241 = vmatprep.subr.mxu0 0.0
    %242 = vmatpush2.msra.mxu0 0.0
    %243 = vmatprep.subr.mxu0 0.0
    %244 = vmatpush2.msra.mxu0 0.0
    %245 = vmatprep.subr.mxu0 0.0
    %246 = vmatpush2.msra.mxu0 0.0
    %247 = vmatprep.subr.mxu0 0.0
    %248 = vmatpush2.msra.mxu0 0.0
    %249 = vmatprep.subr.mxu0 0.0
    %250 = vmatpush2.msra.mxu0 0.0
    %251 = vmatprep.subr.mxu0 0.0
    %252 = vmatpush2.msra.mxu0 0.0
    %253 = vmatprep.subr.mxu0 0.0
    %254 = vmatpush2.msra.mxu0 0.0
    %255 = vmatprep.subr.mxu0 0.0
    %256 = vmatpush2.msra.mxu0 0.0
    %257 = vmatprep.subr.mxu0 0.0
    %258 = vmatpush2.msra.mxu0 0.0
    %259 = vmatprep.subr.mxu0 0.0
    %260 = vmatpush2.msra.mxu0 0.0
    %261 = vmatprep.subr.mxu0 0.0
    %262 = vmatpush2.msra.mxu0 0.0
    %263 = vmatprep.mubr.f32.mxu0 0.0
    %264 = vmatmul.mubr.f32.gmra.mxu0 %v191
    %v265 = vpop.f32.mrf.mxu0
    %v266 = vadd.f32 0.0, %v265
    %v267 = vpop.f32.mrf.mxu0
    %268 = vmatprep.mubr.f32.mxu0 0.0
    %269 = vmatmul.mubr.f32.gmra.mxu0 %v193
    %v270 = vpop.f32.mrf.mxu0
    %v271 = vadd.f32 0.0, %v270
    %v272 = vpop.f32.mrf.mxu0
    %273 = vmatprep.mubr.f32.mxu0 0.0
    %274 = vmatmul.mubr.f32.gmra.mxu0 %v195
    %v275 = vpop.f32.mrf.mxu0
    %v276 = vadd.f32 0.0, %v275
    %v277 = vpop.f32.mrf.mxu0
    %278 = vmatprep.mubr.f32.mxu0 0.0
    %279 = vmatmul.mubr.f32.gmra.mxu0 %v197
    %v280 = vpop.f32.mrf.mxu0
    %v281 = vadd.f32 0.0, %v280
    %v282 = vpop.f32.mrf.mxu0
    %283 = vdwg.mxu0
    %v288 = vcombine.high %v266, %v266
    %v290 = vunpack.c.l.s4 1983009808
    %v291 = vunpack.c.0.s8 %v290
    %v292 = vlaneseq
    %v293 = vshrl.u32 %v292, 7
    %v294 = vsub.s32 %v291, %v293
    %v295 = vrot.slane %v266, %v294
    %v297 = vunpack.c.l.s4 1983009808
    %v298 = vunpack.c.0.s8 %v297
    %v299 = vlaneseq
    %v300 = vshrl.u32 %v299, 7
    %v301 = vsub.s32 %v298, %v300
    %v302 = vrot.slane %v288, %v301
    %v303 = vcombine.high %v295, %v295
    %v304 = vcombine.high %v302, %v302
    %v305 = vcombine.high %v271, %v271
    %v307 = vunpack.c.l.s4 1983009808
    %v308 = vunpack.c.0.s8 %v307
    %v309 = vlaneseq
    %v310 = vshrl.u32 %v309, 7
    %v311 = vsub.s32 %v308, %v310
    %v312 = vrot.slane %v271, %v311
    %v314 = vunpack.c.l.s4 1983009808
    %v315 = vunpack.c.0.s8 %v314
    %v316 = vlaneseq
    %v317 = vshrl.u32 %v316, 7
    %v318 = vsub.s32 %v315, %v317
    %v319 = vrot.slane %v305, %v318
    %v320 = vcombine.high %v312, %v312
    %v321 = vcombine.high %v319, %v319
    %v322 = vcombine.high %v276, %v276
    %v324 = vunpack.c.l.s4 1983009808
    %v325 = vunpack.c.0.s8 %v324
    %v326 = vlaneseq
    %v327 = vshrl.u32 %v326, 7
    %v328 = vsub.s32 %v325, %v327
    %v329 = vrot.slane %v276, %v328
    %v331 = vunpack.c.l.s4 1983009808
    %v332 = vunpack.c.0.s8 %v331
    %v333 = vlaneseq
    %v334 = vshrl.u32 %v333, 7
    %v335 = vsub.s32 %v332, %v334
    %v336 = vrot.slane %v322, %v335
    %v337 = vcombine.high %v329, %v329
    %v338 = vcombine.high %v336, %v336
    %v340 = vunpack.c.l.s4 1983009808
    %v341 = vunpack.c.0.s8 %v340
    %v342 = vlaneseq
    %v343 = vshrl.u32 %v342, 7
    %v344 = vsub.s32 %v341, %v343
    %v345 = vrot.slane %v281, %v344
    %v346 = vcombine.high %v345, %v345
    %v347 = vcombine.low %v295, %v303
    %v348 = vcombine.low %v302, %v304
    %v350 = vunpack.c.l.s4 1983009808
    %v351 = vunpack.c.0.s8 %v350
    %v352 = vlaneseq
    %v353 = vshrl.u32 %v352, 7
    %v354 = vsub.s32 %v351, %v353
    %v355 = vrot.slane %v347, %v354
    %v357 = vunpack.c.l.s4 1983009808
    %v358 = vunpack.c.0.s8 %v357
    %v359 = vlaneseq
    %v360 = vshrl.u32 %v359, 7
    %v361 = vsub.s32 %v358, %v360
    %v362 = vrot.slane %v348, %v361
    %v363 = vcombine.low %v355, %v362
    %v364 = vcombine.low %v321, %v329
    %v365 = vcombine.low %v337, %v336
    %v367 = vunpack.c.l.s4 1983009808
    %v368 = vunpack.c.0.s8 %v367
    %v369 = vlaneseq
    %v370 = vshrl.u32 %v369, 7
    %v371 = vsub.s32 %v368, %v370
    %v372 = vrot.slane %v364, %v371
    %v374 = vunpack.c.l.s4 1983009808
    %v375 = vunpack.c.0.s8 %v374
    %v376 = vlaneseq
    %v377 = vshrl.u32 %v376, 7
    %v378 = vsub.s32 %v375, %v377
    %v379 = vrot.slane %v365, %v378
    %v380 = vcombine.low %v372, %v379
    %v384 = vunpack.c.l.s4 1983009808
    %v385 = vunpack.c.0.s8 %v384
    %v386 = vlaneseq
    %v387 = vshrl.u32 %v386, 7
    %v388 = vsub.s32 %v385, %v387
    %v389 = vrot.slane %v312, %v388
    %v391 = vunpack.c.l.s4 1983009808
    %v392 = vunpack.c.0.s8 %v391
    %v393 = vlaneseq
    %v394 = vshrl.u32 %v393, 7
    %v395 = vsub.s32 %v392, %v394
    %v396 = vrot.slane %v338, %v395
    %vm397 = vcmask 1046528
    %v398 = vrot.slane %v363, 1
    %v399 = vrot.slane %v389, 1
    %v400 = vsel %vm397, %v398, %v399
    %v401 = vrot.slane %v380, 1
    %v402 = vrot.slane %v396, 1
    %v403 = vsel %vm397, %v401, %v402
    %404 = vrot.lane.b32.xlu0 %v400, 16
    %v405 = vpop.permute.xlu0 %404
    %406 = vrot.lane.b32.xlu0 %v403, 16
    %v407 = vpop.permute.xlu0 %406
    %v410 = vcombine.low %v303, %v302
    %v411 = vcombine.low %v304, %v312
    %v413 = vunpack.c.l.s4 1983009808
    %v414 = vunpack.c.0.s8 %v413
    %v415 = vlaneseq
    %v416 = vshrl.u32 %v415, 7
    %v417 = vsub.s32 %v414, %v416
    %v418 = vrot.slane %v410, %v417
    %v420 = vunpack.c.l.s4 1983009808
    %v421 = vunpack.c.0.s8 %v420
    %v422 = vlaneseq
    %v423 = vshrl.u32 %v422, 7
    %v424 = vsub.s32 %v421, %v423
    %v425 = vrot.slane %v411, %v424
    %v426 = vcombine.low %v418, %v425
    %v427 = vcombine.low %v329, %v337
    %v428 = vcombine.low %v336, %v338
    %v430 = vunpack.c.l.s4 1983009808
    %v431 = vunpack.c.0.s8 %v430
    %v432 = vlaneseq
    %v433 = vshrl.u32 %v432, 7
    %v434 = vsub.s32 %v431, %v433
    %v435 = vrot.slane %v427, %v434
    %v437 = vunpack.c.l.s4 1983009808
    %v438 = vunpack.c.0.s8 %v437
    %v439 = vlaneseq
    %v440 = vshrl.u32 %v439, 7
    %v441 = vsub.s32 %v438, %v440
    %v442 = vrot.slane %v428, %v441
    %v443 = vcombine.low %v435, %v442
    %444 = vrot.lane.b32.xlu0 %v426, 32
    %v445 = vpop.permute.xlu0 %444
    %446 = vrot.lane.b32.xlu0 %v443, 32
    %v447 = vpop.permute.xlu0 %446
    %v451 = vunpack.c.l.s4 1983009808
    %v452 = vunpack.c.0.s8 %v451
    %v453 = vlaneseq
    %v454 = vshrl.u32 %v453, 7
    %v455 = vsub.s32 %v452, %v454
    %v456 = vrot.slane %v320, %v455
    %v458 = vunpack.c.l.s4 1983009808
    %v459 = vunpack.c.0.s8 %v458
    %v460 = vlaneseq
    %v461 = vshrl.u32 %v460, 7
    %v462 = vsub.s32 %v459, %v461
    %v463 = vrot.slane %v345, %v462
    %v464 = vrot.slane %v426, 1
    %v465 = vrot.slane %v456, 1
    %v466 = vsel %vm397, %v464, %v465
    %v467 = vrot.slane %v443, 1
    %v468 = vrot.slane %v463, 1
    %v469 = vsel %vm397, %v467, %v468
    %470 = vrot.lane.b32.xlu0 %v466, 48
    %v471 = vpop.permute.xlu0 %470
    %472 = vrot.lane.b32.xlu0 %v469, 48
    %v473 = vpop.permute.xlu0 %472
    %v476 = vcombine.low %v312, %v320
    %v478 = vunpack.c.l.s4 1983009808
    %v479 = vunpack.c.0.s8 %v478
    %v480 = vlaneseq
    %v481 = vshrl.u32 %v480, 7
    %v482 = vsub.s32 %v479, %v481
    %v483 = vrot.slane %v476, %v482
    %v484 = vcombine.low %v362, %v483
    %v485 = vcombine.low %v338, %v345
    %v487 = vunpack.c.l.s4 1983009808
    %v488 = vunpack.c.0.s8 %v487
    %v489 = vlaneseq
    %v490 = vshrl.u32 %v489, 7
    %v491 = vsub.s32 %v488, %v490
    %v492 = vrot.slane %v485, %v491
    %v493 = vcombine.low %v379, %v492
    %494 = vrot.lane.b32.xlu0 %v484, 64
    %v495 = vpop.permute.xlu0 %494
    %496 = vrot.lane.b32.xlu0 %v493, 64
    %v497 = vpop.permute.xlu0 %496
    %v501 = vunpack.c.l.s4 1983009808
    %v502 = vunpack.c.0.s8 %v501
    %v503 = vlaneseq
    %v504 = vshrl.u32 %v503, 7
    %v505 = vsub.s32 %v502, %v504
    %v506 = vrot.slane %v319, %v505
    %v508 = vunpack.c.l.s4 1983009808
    %v509 = vunpack.c.0.s8 %v508
    %v510 = vlaneseq
    %v511 = vshrl.u32 %v510, 7
    %v512 = vsub.s32 %v509, %v511
    %v513 = vrot.slane %v346, %v512
    %v514 = vrot.slane %v484, 1
    %v515 = vrot.slane %v506, 1
    %v516 = vsel %vm397, %v514, %v515
    %v517 = vrot.slane %v493, 1
    %v518 = vrot.slane %v513, 1
    %v519 = vsel %vm397, %v517, %v518
    %520 = vrot.lane.b32.xlu0 %v516, 80
    %v521 = vpop.permute.xlu0 %520
    %522 = vrot.lane.b32.xlu0 %v519, 80
    %v523 = vpop.permute.xlu0 %522
    %v526 = vcombine.low %v320, %v319
    %v528 = vunpack.c.l.s4 1983009808
    %v529 = vunpack.c.0.s8 %v528
    %v530 = vlaneseq
    %v531 = vshrl.u32 %v530, 7
    %v532 = vsub.s32 %v529, %v531
    %v533 = vrot.slane %v526, %v532
    %v534 = vcombine.low %v425, %v533
    %v535 = vcombine.low %v345, %v346
    %v537 = vunpack.c.l.s4 1983009808
    %v538 = vunpack.c.0.s8 %v537
    %v539 = vlaneseq
    %v540 = vshrl.u32 %v539, 7
    %v541 = vsub.s32 %v538, %v540
    %v542 = vrot.slane %v535, %v541
    %v543 = vcombine.low %v442, %v542
    %544 = vrot.lane.b32.xlu0 %v534, 96
    %v545 = vpop.permute.xlu0 %544
    %546 = vrot.lane.b32.xlu0 %v543, 96
    %v547 = vpop.permute.xlu0 %546
    %vm550 = vcmask 130048
    %v551 = vsel %vm550, %v363, %v405
    %v552 = vsel %vm550, %v380, %v407
    %v553 = vsel %vm190, %v551, %v445
    %v554 = vsel %vm190, %v552, %v447
    %vm555 = vcmask 392192
    %v556 = vsel %vm555, %v553, %v471
    %v557 = vsel %vm555, %v554, %v473
    %vm558 = vcmask 523264
    %v559 = vsel %vm558, %v556, %v495
    %v560 = vsel %vm558, %v557, %v497
    %vm561 = vcmask 654336
    %v562 = vsel %vm561, %v559, %v521
    %v563 = vsel %vm561, %v560, %v523
    %vm564 = vcmask 785408
    %v565 = vsel %vm564, %v562, %v545
    %v566 = vsel %vm564, %v563, %v547
    %v567 = vld [vmem:[%s2] sm:$0xff]
    %v568 = vld [vmem:[%s2 + $0x8] sm:$0xff]
    %v569 = vld [vmem:[%s2 + $0x10] sm:$0xff]
    %v570 = vld [vmem:[%s2 + $0x18] sm:$0xff]
    %v571 = vld [vmem:[%s2 + $0x20] sm:$0xff]
    %v572 = vld [vmem:[%s2 + $0x28] sm:$0xff]
    %v573 = vld [vmem:[%s2 + $0x30] sm:$0xff]
    %v574 = vld [vmem:[%s2 + $0x38] sm:$0xff]
    %v575 = vld [vmem:[%s2 + $0x40] sm:$0xff]
    %v576 = vld [vmem:[%s2 + $0x48] sm:$0xff]
    %v577 = vld [vmem:[%s2 + $0x50] sm:$0xff]
    %v578 = vld [vmem:[%s2 + $0x58] sm:$0xff]
    %v579 = vld [vmem:[%s2 + $0x60] sm:$0xff]
    %v580 = vld [vmem:[%s2 + $0x68] sm:$0xff]
    %v581 = vld [vmem:[%s3] sm:$0x1]
    %v583 = vlaneseq
    %v584 = vshrl.u32 %v583, 7
    %v585 = vsub.s32 0, %v584
    %v586 = vrot.slane %v581, %v585
    %vm588 = vcmask 916480
    %v590 = vsel %vm588, %v565, 0
    %v593 = vsel %vm588, %v566, 0
    %595 = vmatprep.subr.mxu0 0.0
    %596 = vmatpush1.msra.mxu0 0.0
    %597 = vmatprep.subr.mxu0 0.0
    %598 = vmatpush1.msra.mxu0 0.0
    %599 = vmatprep.subr.mxu0 0.0
    %600 = vmatpush1.msra.mxu0 %v580
    %601 = vmatprep.subr.mxu0 0.0
    %602 = vmatpush1.msra.mxu0 %v579
    %603 = vmatprep.subr.mxu0 0.0
    %604 = vmatpush1.msra.mxu0 %v578
    %605 = vmatprep.subr.mxu0 0.0
    %606 = vmatpush1.msra.mxu0 %v577
    %607 = vmatprep.subr.mxu0 0.0
    %608 = vmatpush1.msra.mxu0 %v576
    %609 = vmatprep.subr.mxu0 0.0
    %610 = vmatpush1.msra.mxu0 %v575
    %611 = vmatprep.subr.mxu0 0.0
    %612 = vmatpush1.msra.mxu0 %v574
    %613 = vmatprep.subr.mxu0 0.0
    %614 = vmatpush1.msra.mxu0 %v573
    %615 = vmatprep.subr.mxu0 0.0
    %616 = vmatpush1.msra.mxu0 %v572
    %617 = vmatprep.subr.mxu0 0.0
    %618 = vmatpush1.msra.mxu0 %v571
    %619 = vmatprep.subr.mxu0 0.0
    %620 = vmatpush1.msra.mxu0 %v570
    %621 = vmatprep.subr.mxu0 0.0
    %622 = vmatpush1.msra.mxu0 %v569
    %623 = vmatprep.subr.mxu0 0.0
    %624 = vmatpush1.msra.mxu0 %v568
    %625 = vmatprep.subr.mxu0 0.0
    %626 = vmatpush1.msra.mxu0 %v567
    %627 = vmatprep.subr.mxu0 0.0
    %628 = vmatpush2.msra.mxu0 0.0
    %629 = vmatprep.subr.mxu0 0.0
    %630 = vmatpush2.msra.mxu0 0.0
    %631 = vmatprep.subr.mxu0 0.0
    %632 = vmatpush2.msra.mxu0 0.0
    %633 = vmatprep.subr.mxu0 0.0
    %634 = vmatpush2.msra.mxu0 0.0
    %635 = vmatprep.subr.mxu0 0.0
    %636 = vmatpush2.msra.mxu0 0.0
    %637 = vmatprep.subr.mxu0 0.0
    %638 = vmatpush2.msra.mxu0 0.0
    %639 = vmatprep.subr.mxu0 0.0
    %640 = vmatpush2.msra.mxu0 0.0
    %641 = vmatprep.subr.mxu0 0.0
    %642 = vmatpush2.msra.mxu0 0.0
    %643 = vmatprep.subr.mxu0 0.0
    %644 = vmatpush2.msra.mxu0 0.0
    %645 = vmatprep.subr.mxu0 0.0
    %646 = vmatpush2.msra.mxu0 0.0
    %647 = vmatprep.subr.mxu0 0.0
    %648 = vmatpush2.msra.mxu0 0.0
    %649 = vmatprep.subr.mxu0 0.0
    %650 = vmatpush2.msra.mxu0 0.0
    %651 = vmatprep.subr.mxu0 0.0
    %652 = vmatpush2.msra.mxu0 0.0
    %653 = vmatprep.subr.mxu0 0.0
    %654 = vmatpush2.msra.mxu0 0.0
    %655 = vmatprep.subr.mxu0 0.0
    %656 = vmatpush2.msra.mxu0 0.0
    %657 = vmatprep.subr.mxu0 0.0
    %658 = vmatpush2.msra.mxu0 0.0
    %659 = vmatprep.mubr.f32.mxu0 0.0
    %660 = vmatmul.mubr.f32.gmra.mxu0 %v590
    %v661 = vpop.f32.mrf.mxu0
    %v662 = vadd.f32 %v586, %v661
    %v663 = vpop.f32.mrf.mxu0
    %664 = vmatprep.mubr.f32.mxu0 0.0
    %665 = vmatmul.mubr.f32.gmra.mxu0 %v593
    %v666 = vpop.f32.mrf.mxu0
    %v667 = vadd.f32 %v586, %v666
    %v668 = vpop.f32.mrf.mxu0
    %669 = vdwg.mxu0
    %v670 = vmax.f32 %v662, 0.0
    %v671 = vmax.f32 %v667, 0.0
    %v672 = vsel %vm564, %v670, -inf
    %v673 = vrot.slane %v672, 4
    %v674 = vmax.f32 %v672, %v673
    %v675 = vrot.slane %v674, 2
    %v676 = vmax.f32 %v674, %v675
    %v677 = vrot.slane %v676, 1
    %v678 = vmax.f32 %v676, %v677
    %v679 = vsel %vm564, %v671, -inf
    %v680 = vrot.slane %v679, 4
    %v681 = vmax.f32 %v679, %v680
    %v682 = vrot.slane %v681, 2
    %v683 = vmax.f32 %v681, %v682
    %v684 = vrot.slane %v683, 1
    %v685 = vmax.f32 %v683, %v684
    %vm688 = vcmask 1041409
    %v689 = vsel %vm688, %v685, %v678
    %vm691 = vcmask 779264
    %692 = vst.msk [vmem:[#allocation4] sm:$0x3] %vm691, %v689
    %v693 = vld [vmem:[%s4] sm:$0x1]
    %v694 = vlaneseq
    %v695 = vshrl.u32 %v694, 7
    %v696 = vsub.s32 0, %v695
    %v697 = vrot.slane %v693, %v696
    %v698 = vmul.f32 %v678, %v697
    %v699 = vmul.f32 %v685, %v697
    %v702 = vrot.slane %v699, 7
    %v703 = vsel %vm688, %v702, %v698
    %v705 = vsel %vm691, %v703, 0.0
    %706 = vadd.xlane.f32.xlu0 %v705
    %v707 = vpop.xlane.xlu0 %706
    %v708 = vld [vmem:[%s4 + $0x1] sm:$0x1]
    %v709 = vlaneseq
    %v710 = vshrl.u32 %v709, 7
    %v711 = vsub.s32 0, %v710
    %v712 = vrot.slane %v708, %v711
    %v713 = vmul.f32 %v678, %v712
    %v714 = vmul.f32 %v685, %v712
    %v717 = vrot.slane %v714, 7
    %v718 = vsel %vm688, %v717, %v713
    %v720 = vsel %vm691, %v718, 0.0
    %721 = vadd.xlane.f32.xlu0 %v720
    %v722 = vpop.xlane.xlu0 %721
    %vm723 = vcmask 7168
    %v724 = vsel %vm723, %v707, %v722
    %v725 = vld [vmem:[%s5] sm:$0x1]
    %v727 = vlaneseq
    %v728 = vshrl.u32 %v727, 7
    %v729 = vsub.s32 0, %v728
    %v730 = vrot.slane %v725, %v729
    %v732 = vadd.f32 %v724, %v730
    %vm733 = vcmask 9216
    %734 = vst.msk [vmem:[#allocation2] sm:$0x3] %vm733, %v732
    // Predicated region
    $region26: #{tpu_custom_call.1} parent=1 // pred_check
      _
    $region27: #{tpu_custom_call.1} parent=1 // pred_check_branch
      %736 = sbr.rel (0) target = $region29
    $region28: #{tpu_custom_call.1} parent=1 // pred_region
      %s738 = ssub.s32 32, 32
      %739 = vsyncadd [#allocation3], %s738
      %s741 = sshll.u32 [#allocation2], 4
      %s742 = int_to_ptr.vmem [resolvable:$true] %s741
      %744 = dma.vmem_to_hbm [thread:$0]  %s742, 32, %s6, [#allocation3]
    $region29: #{tpu_custom_call.1} parent=1 // pred_fallthru
      _
    // Predicated region
    $region30: #{tpu_custom_call.1} parent=1 // pred_check
      _
    $region31: #{tpu_custom_call.1} parent=1 // pred_check_branch
      %746 = sbr.rel (0) target = $region33
    $region32: #{tpu_custom_call.1} parent=1 // pred_region
      %s748 = ssub.s32 32, 32
      %749 = vsyncadd [#allocation5], %s748
      %s751 = sshll.u32 [#allocation4], 4
      %s752 = int_to_ptr.vmem [resolvable:$true] %s751
      %754 = dma.vmem_to_hbm [thread:$0]  %s752, 32, %s7, [#allocation5]
    $region33: #{tpu_custom_call.1} parent=1 // pred_fallthru
      _
    // Predicated region
    $region34: #{tpu_custom_call.1} parent=1 // pred_check
      _
    $region35: #{tpu_custom_call.1} parent=1 // pred_check_branch
      %756 = sbr.rel (0) target = $region37
    $region36: #{tpu_custom_call.1} parent=1 // pred_region
      %757 = dma.done [#allocation3], 32
    $region37: #{tpu_custom_call.1} parent=1 // pred_fallthru
      _
    // Predicated region
    $region38: #{tpu_custom_call.1} parent=1 // pred_check
      _
    $region39: #{tpu_custom_call.1} parent=1 // pred_check_branch
      %759 = sbr.rel (0) target = $region41
    $region40: #{tpu_custom_call.1} parent=1 // pred_region
      %760 = dma.done [#allocation5], 32
    $region41: #{tpu_custom_call.1} parent=1 // pred_fallthru
      _
    %761 = vsyncpa [#allocation3], 1
    %762 = vsyncpa [#allocation5], 1

</llo_original>
